<compile_context>
chip_gen: v7x
topology: tpu7x:2x2x1
jax: 0.10.0
libtpu: 0.0.40
codegen_flags: <defaults>
</compile_context>

<pallas_src>
import math
from functools import partial

import jax
import jax.numpy as jnp
from jax.experimental import pallas as pl
from jax.experimental.pallas import tpu as pltpu


def build_pe_table(max_seq_len: int, embed_dim: int) -> jnp.ndarray:
    """Deterministic sinusoidal positional-encoding buffer (max_seq_len, embed_dim)."""
    position = jnp.arange(max_seq_len, dtype=jnp.float32)[:, None]            # (L, 1)
    div_term = jnp.exp(
        jnp.arange(0, embed_dim, 2, dtype=jnp.float32)
        * (-math.log(10000.0) / embed_dim)
    )                                                                          # (E/2,)
    pe = jnp.zeros((max_seq_len, embed_dim), dtype=jnp.float32)
    pe = pe.at[:, 0::2].set(jnp.sin(position * div_term))
    pe = pe.at[:, 1::2].set(jnp.cos(position * div_term))
    return pe


def _pick_tiles(B: int, N: int, itemsize: int, n_streams: int):
    """Tile sizes for the lane-dense flattened (B, N=S*E) layout."""
    # Last (lane) dim: a multiple of 128 that divides N, else the full extent
    # (a block dim equal to the full array dim is always legal).
    if N % 128 == 0:
        tN = min(N, 2048)
        while N % tN != 0:
            tN -= 128
    else:
        tN = N
    # Second-minor (sublane) dim: a multiple of 8 that divides B, sized so
    # double-buffered x/out(/rand) tiles stay under an ~8 MiB budget (fits
    # v5e's 16 MiB scoped-VMEM default with headroom; trivially fits v6e/v7x).
    budget = 8 * 1024 * 1024
    rows = max(8, budget // max(1, 2 * n_streams * tN * itemsize))
    if B % 8 == 0:
        tB = min(B, (rows // 8) * 8)
        while B % tB != 0:
            tB -= 8
    else:
        tB = B
    return tB, tN


def _add_pe_kernel(x_ref, pe_ref, o_ref):
    # x_ref: (tB, tN), pe_ref: (1, tN) -> cheap sublane-broadcast add on the VPU.
    o_ref[...] = (x_ref[...] + pe_ref[...]).astype(o_ref.dtype)


def _add_pe_dropout_kernel(x_ref, pe_ref, u_ref, o_ref, *, keep_prob):
    y = x_ref[...] + pe_ref[...]
    keep = u_ref[...] < keep_prob
    o_ref[...] = jnp.where(keep, y * (1.0 / keep_prob), jnp.zeros_like(y)).astype(o_ref.dtype)


def positional_encoding(x: jnp.ndarray,
                        pe_full: jnp.ndarray,
                        *,
                        dropout_p: float = 0.1,
                        training: bool = False,
                        rng_key=None) -> jnp.ndarray:
    """Apply x + pe[:seq_len] (+ inverted dropout if training) via a Pallas kernel."""
    B, S, E = x.shape
    N = S * E
    dtype = x.dtype

    # Lane-dense flattening: pe broadcasts over batch only, so it flattens to
    # a single (1, S*E) row that pairs element-for-element with x.reshape(B, S*E).
    x2 = x.reshape(B, N)
    pe2 = pe_full[:S].astype(dtype).reshape(1, N)

    apply_dropout = bool(training) and float(dropout_p) > 0.0
    n_streams = 3 if apply_dropout else 2                      # x, out (, rand)
    tB, tN = _pick_tiles(B, N, jnp.dtype(dtype).itemsize, n_streams)
    grid = (B // tB, N // tN)

    x_spec = pl.BlockSpec((tB, tN), lambda i, j: (i, j))
    pe_spec = pl.BlockSpec((1, tN), lambda i, j: (0, j))
    out_spec = pl.BlockSpec((tB, tN), lambda i, j: (i, j))

    compiler_params = pltpu.CompilerParams(
        dimension_semantics=("parallel", "parallel"))          # independent blocks

    if apply_dropout:
        if rng_key is None:
            rng_key = jax.random.PRNGKey(0)
        keep_prob = 1.0 - float(dropout_p)
        # TODO(synk): on real TPU hardware the randoms could come from
        # pltpu.prng_seed / pltpu.prng_random_bits inside the kernel to avoid
        # streaming this tensor from HBM; drawn host-side here because those
        # primitives do not lower in interpret mode.
        u = jax.random.uniform(rng_key, (B, N), dtype=jnp.float32)
        out2 = pl.pallas_call(
            partial(_add_pe_dropout_kernel, keep_prob=keep_prob),
            out_shape=jax.ShapeDtypeStruct((B, N), dtype),
            grid=grid,
            in_specs=[x_spec, pe_spec, x_spec],
            out_specs=out_spec,
            compiler_params=compiler_params,
        )(x2, pe2, u)
    else:
        # NOTE: in eval mode this is a single broadcast add that XLA already
        # runs at HBM roofline; the kernel is kept so the module's forward
        # lives in Pallas and the fused-dropout path shares the same body.
        out2 = pl.pallas_call(
            _add_pe_kernel,
            out_shape=jax.ShapeDtypeStruct((B, N), dtype),
            grid=grid,
            in_specs=[x_spec, pe_spec],
            out_specs=out_spec,
            compiler_params=compiler_params,
        )(x2, pe2)

    return out2.reshape(B, S, E)


if __name__ == "__main__":
    # Small shapes consistent with forward: (batch_size, seq_len, embed_dim)
    B, S, E = 2, 8, 32
    MAX_SEQ_LEN = 64
    DROPOUT_P = 0.1

    key = jax.random.PRNGKey(0)
    x_key, drop_key = jax.random.split(key)
    x = jax.random.normal(x_key, (B, S, E), dtype=jnp.float32)
    pe_full = build_pe_table(MAX_SEQ_LEN, E)

    # Eval-mode forward (nn.Dropout is identity in eval()).
    out = jax.block_until_ready(
        positional_encoding(x, pe_full, dropout_p=DROPOUT_P, training=False))
    ref = x + pe_full[:S][None, :, :]
    assert out.shape == (B, S, E)
    assert jnp.allclose(out, ref, atol=1e-6, rtol=1e-6), "eval mismatch vs reference"

    # Training-mode forward (inverted dropout fused into the kernel).
    out_train = jax.block_until_ready(
        positional_encoding(x, pe_full, dropout_p=DROPOUT_P, training=True,
                            rng_key=drop_key))
    keep_prob = 1.0 - DROPOUT_P
    u_ref = jax.random.uniform(drop_key, (B, S * E), dtype=jnp.float32).reshape(B, S, E)
    ref_train = jnp.where(u_ref < keep_prob, ref * (1.0 / keep_prob), 0.0)
    assert out_train.shape == (B, S, E)
    assert jnp.allclose(out_train, ref_train, atol=1e-6, rtol=1e-6), "train mismatch vs reference"

    print("KERNEL_OK")
</pallas_src>

<mosaic_0001>
module attributes {stable_mosaic.version = 11 : i64} {
  func.func @_add_pe_kernel(%arg0: i32, %arg1: i32, %arg2: memref<2x256xf32, #tpu.memory_space<vmem>>, %arg3: memref<1x256xf32, #tpu.memory_space<vmem>>, %arg4: memref<2x256xf32, #tpu.memory_space<vmem>>) attributes {dimension_semantics = [#tpu.dimension_semantics<parallel>, #tpu.dimension_semantics<parallel>], iteration_bounds = array<i64: 1, 1>, scalar_prefetch = 0 : i64, scratch_operands = 0 : i64, tpu.core_type = #tpu.core_type<tc>, window_params = [{transform_indices = @transform_0, window_bounds = array<i64: 2, 256>}, {transform_indices = @transform_1, window_bounds = array<i64: 1, 256>}, {transform_indices = @transform_2, window_bounds = array<i64: 2, 256>}]} {
    %c0 = arith.constant 0 : index
    %c0_0 = arith.constant 0 : index
    %0 = vector.load %arg2[%c0, %c0_0] : memref<2x256xf32, #tpu.memory_space<vmem>>, vector<2x256xf32>
    %c0_1 = arith.constant 0 : index
    %c0_2 = arith.constant 0 : index
    %1 = vector.load %arg3[%c0_1, %c0_2] : memref<1x256xf32, #tpu.memory_space<vmem>>, vector<1x256xf32>
    %2 = vector.broadcast %1 : vector<1x256xf32> to vector<2x256xf32>
    %3 = arith.addf %0, %2 : vector<2x256xf32>
    %c0_3 = arith.constant 0 : index
    %c0_4 = arith.constant 0 : index
    %4 = vector.load %arg4[%c0_3, %c0_4] : memref<2x256xf32, #tpu.memory_space<vmem>>, vector<2x256xf32>
    tpu.vector_store %arg4[%c0_3, %c0_4], %3 {strides = array<i32>} : memref<2x256xf32, #tpu.memory_space<vmem>>, vector<2x256xf32>,
    return
  }
  func.func @transform_0(%arg0: i32, %arg1: i32) -> (i32, i32) {
    %c0_i32 = arith.constant 0 : i32
    return %arg0, %arg1 : i32, i32
  }
  func.func @transform_1(%arg0: i32, %arg1: i32) -> (i32, i32) {
    %c0_i32 = arith.constant 0 : i32
    %c0_i32_0 = arith.constant 0 : i32
    return %c0_i32, %arg1 : i32, i32
  }
  func.func @transform_2(%arg0: i32, %arg1: i32) -> (i32, i32) {
    %c0_i32 = arith.constant 0 : i32
    return %arg0, %arg1 : i32, i32
  }
}

</mosaic_0001>

<llo_original>
// kernel: tpu_custom_call.1
$region0: #{tpu_custom_call.1}
  #allocation0 [shape = 'u32[]', space=smem, size = 0x4, offset = 0x4, fixed_abs, tag = 'smem constant byte address 0x4 - core index']
  #allocation1 [shape = 'u32[144,128]{1,0:T(1,128)}', space=vmem, size = 0x12000, scoped, tag = 'internal scratch']
  %s0 = inlined_call_operand.hbm [shape: f32[2,256], index: 0, kind: input, shape index: {}]
  %s1 = inlined_call_operand.vmem [shape: f32[1,256], index: 1, kind: input, shape index: {}]
  %s2 = inlined_call_operand.hbm [shape: f32[2,256], index: 2, kind: output, shape index: {}]
  %s3 = sld [smem:[#allocation0]]
  $region22: #{tpu_custom_call.1} parent=0
    _
  %s5 = ssub.s32 1, %s3
  %s6 = scalar_select 0, %s5, %s3
  $region1: #{tpu_custom_call.1} parent=0
    #allocation2 [shape = 'u8[2048]{0}', space=vmem, size = 0x800, scoped, tag = 'input window, operand 0, single buffered']
    #allocation3 [shape = 's32[1]{0}', space=sflag, size = 0x4, scoped, tag = 'scoped memory for tpu_custom_call.1']
    #allocation4 [shape = 's32[1]{0}', space=sflag, size = 0x4, scoped, tag = 'scoped memory for tpu_custom_call.1']
    #allocation5 [shape = 'u8[2048]{0}', space=vmem, size = 0x800, scoped, tag = 'output window, operand 0, single buffered']
    %7 = vsyncpa [#allocation3], 0
    %8 = vsyncpa [#allocation4], 0
    // Predicated region
    $region2: #{tpu_custom_call.1} parent=1 // pred_check
      _
    $region3: #{tpu_custom_call.1} parent=1 // pred_check_branch
      %10 = sbr.rel (0) target = $region5
    $region4: #{tpu_custom_call.1} parent=1 // pred_region
      %s12 = ssub.s32 64, 64
      %13 = vsyncadd [#allocation3], %s12
      %s15 = sshll.u32 [#allocation2], 4
      %s16 = int_to_ptr.vmem [resolvable:$true] %s15
      %18 = dma.hbm_to_vmem [thread:$0]  %s0, 64, %s16, [#allocation3]
    $region5: #{tpu_custom_call.1} parent=1 // pred_fallthru
      _
    // Predicated region
    $region6: #{tpu_custom_call.1} parent=1 // pred_check
      _
    $region7: #{tpu_custom_call.1} parent=1 // pred_check_branch
      %20 = sbr.rel (0) target = $region9
    $region8: #{tpu_custom_call.1} parent=1 // pred_region
      _
    $region9: #{tpu_custom_call.1} parent=1 // pred_fallthru
      _
    // Predicated region
    $region10: #{tpu_custom_call.1} parent=1 // pred_check
      _
    $region11: #{tpu_custom_call.1} parent=1 // pred_check_branch
      %22 = sbr.rel (0) target = $region13
    $region12: #{tpu_custom_call.1} parent=1 // pred_region
      %23 = dma.done [#allocation3], 64
    $region13: #{tpu_custom_call.1} parent=1 // pred_fallthru
      _
    %v24 = vld [vmem:[#allocation2] sm:$0xf]
    %v25 = vld [vmem:[%s1] sm:$0x3]
    %v27 = vlaneseq
    %v28 = vshrl.u32 %v27, 7
    %v29 = vsub.s32 0, %v28
    %v30 = vrot.slane %v25, %v29
    %v31 = vlaneseq
    %v32 = vshrl.u32 %v31, 7
    %v33 = vsub.s32 1, %v32
    %v34 = vrot.slane %v25, %v33
    %v35 = vcombine.low %v30, %v34
    %v37 = vunpack.c.l.s4 1983009808
    %v38 = vunpack.c.0.s8 %v37
    %v39 = vlaneseq
    %v40 = vshrl.u32 %v39, 7
    %v41 = vsub.s32 %v38, %v40
    %v42 = vrot.slane %v35, %v41
    %v44 = vadd.f32 %v24, %v42
    %45 = vst [vmem:[#allocation5] sm:$0xf] %v44
    // Predicated region
    $region14: #{tpu_custom_call.1} parent=1 // pred_check
      _
    $region15: #{tpu_custom_call.1} parent=1 // pred_check_branch
      %47 = sbr.rel (0) target = $region17
    $region16: #{tpu_custom_call.1} parent=1 // pred_region
      %s49 = ssub.s32 64, 64
      %50 = vsyncadd [#allocation4], %s49
      %s52 = sshll.u32 [#allocation5], 4
      %s53 = int_to_ptr.vmem [resolvable:$true] %s52
      %55 = dma.vmem_to_hbm [thread:$0]  %s53, 64, %s2, [#allocation4]
    $region17: #{tpu_custom_call.1} parent=1 // pred_fallthru
      _
    // Predicated region
    $region18: #{tpu_custom_call.1} parent=1 // pred_check
      _
    $region19: #{tpu_custom_call.1} parent=1 // pred_check_branch
      %57 = sbr.rel (0) target = $region21
    $region20: #{tpu_custom_call.1} parent=1 // pred_region
      %58 = dma.done [#allocation4], 64
    $region21: #{tpu_custom_call.1} parent=1 // pred_fallthru
      _
    %59 = vsyncpa [#allocation3], 1
    %60 = vsyncpa [#allocation4], 1

</llo_original>
